<compile_context>
chip_gen: v7x
topology: tpu7x:2x2x1
jax: 0.10.0
libtpu: 0.0.40
codegen_flags: <defaults>
</compile_context>

<pallas_src>
import functools

import jax
import jax.numpy as jnp
from jax.experimental import pallas as pl
from jax.experimental.pallas import tpu as pltpu

EPS = 1e-5


# -----------------------------------------------------------------------------
# Kernel: fused  Linear -> BatchNorm1d (batch stats) -> [ReLU]  for one N-tile.
# Grid = (N_tiles, K_tiles); reduction axis (K) is last/innermost.
# -----------------------------------------------------------------------------
def _linear_bn_kernel(x_ref, w_ref, b_ref, g_ref, be_ref, o_ref, acc_ref, *,
                      apply_relu):
    k = pl.program_id(1)

    @pl.when(k == 0)
    def _init():
        acc_ref[...] = jnp.zeros_like(acc_ref)

    # MXU matmul of the (B, tile_k) x (tile_k, tile_n) blocks, f32 accumulate.
    acc_ref[...] += jnp.dot(x_ref[...], w_ref[...],
                            preferred_element_type=jnp.float32)

    @pl.when(k == pl.num_programs(1) - 1)
    def _finalize():
        # Bias add (broadcast once per N-tile), all math in f32.
        y = acc_ref[...] + b_ref[...].astype(jnp.float32)            # [B, tn]
        inv_b = 1.0 / y.shape[0]
        # Single-pass batch statistics (per-feature, full batch resident).
        mean = jnp.sum(y, axis=0, keepdims=True) * inv_b             # [1, tn]
        mean_sq = jnp.sum(y * y, axis=0, keepdims=True) * inv_b
        var = jnp.maximum(mean_sq - mean * mean, 0.0)
        # Fold BN affine into a per-feature scale/shift.
        scale = g_ref[...].astype(jnp.float32) * jax.lax.rsqrt(var + EPS)
        shift = be_ref[...].astype(jnp.float32) - mean * scale
        out = y * scale + shift
        if apply_relu:
            out = jnp.maximum(out, 0.0)
        o_ref[...] = out.astype(o_ref.dtype)


# -----------------------------------------------------------------------------
# Per-layer pallas_call wrapper.
# -----------------------------------------------------------------------------
def _linear_bn_layer(x, w, b, g, be, *, apply_relu, out_dtype, tile_n, tile_k):
    B, K = x.shape
    Kw, N = w.shape
    assert K == Kw and K % tile_k == 0 and N % tile_n == 0
    grid = (N // tile_n, K // tile_k)

    out_itemsize = jnp.dtype(out_dtype).itemsize
    # Double-buffered input/weight/output tiles + f32 accumulator + BN rows.
    vmem_need = (2 * B * tile_k * x.dtype.itemsize
                 + 2 * tile_k * tile_n * w.dtype.itemsize
                 + 2 * B * tile_n * out_itemsize
                 + B * tile_n * 4
                 + 6 * tile_n * 4)
    vmem_limit = int(min(max(int(vmem_need * 1.5) + (2 << 20), 16 << 20),
                         64 << 20))

    cost = pl.CostEstimate(
        flops=2 * B * K * N,
        transcendentals=0,
        bytes_accessed=(B * K * x.dtype.itemsize + K * N * w.dtype.itemsize
                        + 3 * N * 4 + B * N * out_itemsize),
    )

    return pl.pallas_call(
        functools.partial(_linear_bn_kernel, apply_relu=apply_relu),
        out_shape=jax.ShapeDtypeStruct((B, N), out_dtype),
        grid_spec=pltpu.PrefetchScalarGridSpec(
            num_scalar_prefetch=0,
            grid=grid,
            in_specs=[
                pl.BlockSpec((B, tile_k), lambda j, k: (0, k)),       # x
                pl.BlockSpec((tile_k, tile_n), lambda j, k: (k, j)),  # W [in,out]
                pl.BlockSpec((1, tile_n), lambda j, k: (0, j)),       # bias
                pl.BlockSpec((1, tile_n), lambda j, k: (0, j)),       # gamma
                pl.BlockSpec((1, tile_n), lambda j, k: (0, j)),       # beta
            ],
            out_specs=pl.BlockSpec((B, tile_n), lambda j, k: (0, j)),
            scratch_shapes=[pltpu.VMEM((B, tile_n), jnp.float32)],
        ),
        compiler_params=pltpu.CompilerParams(
            dimension_semantics=("parallel", "arbitrary"),
            vmem_limit_bytes=vmem_limit,
        ),
        cost_estimate=cost,
    )(x, w, b, g, be)


# -----------------------------------------------------------------------------
# Padding / tiling helpers.
# -----------------------------------------------------------------------------
def _round_up(v, m):
    return (v + m - 1) // m * m


def _pick_tile(dim_p, pref):
    """Largest multiple of 128 <= pref that divides dim_p (dim_p % 128 == 0)."""
    t = max(128, min(pref, dim_p) // 128 * 128)
    while dim_p % t:
        t -= 128
    return t


def _pad_last(a, target, value=0.0):
    pad = target - a.shape[-1]
    if pad == 0:
        return a
    widths = [(0, 0)] * (a.ndim - 1) + [(0, pad)]
    return jnp.pad(a, widths, constant_values=value)


def _pad_weight(w, rows, cols):
    pr, pc = rows - w.shape[0], cols - w.shape[1]
    if pr == 0 and pc == 0:
        return w
    return jnp.pad(w, ((0, pr), (0, pc)))


# -----------------------------------------------------------------------------
# Full projection_MLP forward.
# -----------------------------------------------------------------------------
def projection_mlp(x, params, *, num_layers=3, tile_n=256, tile_k=512):
    """x: [batch, in_dim] f32.  params: see init_params (weights [in, out])."""
    if num_layers not in (2, 3):
        raise Exception("num_layers must be 2 or 3")
    _, in_dim = x.shape
    hidden = params["w1"].shape[1]
    out_dim = params["w3"].shape[1]
    if out_dim != hidden:
        raise ValueError("projection_MLP requires out_dim == hidden_dim "
                         "(layer3 BatchNorm1d width is hidden_dim)")

    compute_dtype = params["w1"].dtype   # bf16 by default (MXU-native)

    in_p = _round_up(in_dim, 128)
    hid_p = _round_up(hidden, 128)
    tn = _pick_tile(hid_p, tile_n)
    tk_in = _pick_tile(in_p, tile_k)
    tk_h = _pick_tile(hid_p, tile_k)

    # Zero-pad feature dims to 128-multiples (gamma padded with 1); padded
    # output features come out exactly 0 and are sliced off below.
    xp = _pad_last(x, in_p).astype(compute_dtype)
    w1 = _pad_weight(params["w1"], in_p, hid_p)
    w2 = _pad_weight(params["w2"], hid_p, hid_p)
    w3 = _pad_weight(params["w3"], hid_p, hid_p)
    b1, b2, b3 = (_pad_last(params[k], hid_p) for k in ("b1", "b2", "b3"))
    g1, g2, g3 = (_pad_last(params[k], hid_p, 1.0) for k in ("g1", "g2", "g3"))
    be1, be2, be3 = (_pad_last(params[k], hid_p) for k in ("be1", "be2", "be3"))

    h = _linear_bn_layer(xp, w1, b1, g1, be1, apply_relu=True,
                         out_dtype=compute_dtype, tile_n=tn, tile_k=tk_in)
    if num_layers == 3:
        h = _linear_bn_layer(h, w2, b2, g2, be2, apply_relu=True,
                             out_dtype=compute_dtype, tile_n=tn, tile_k=tk_h)
    h = _linear_bn_layer(h, w3, b3, g3, be3, apply_relu=False,
                         out_dtype=jnp.float32, tile_n=tn, tile_k=tk_h)
    return h[:, :out_dim]


# -----------------------------------------------------------------------------
# Synthetic params + pure-JAX reference.
# -----------------------------------------------------------------------------
def init_params(key, in_dim, hidden_dim, out_dim, param_dtype=jnp.bfloat16):
    """Shapes match the PyTorch module; weights pre-transposed to [in, out] and
    stored in `param_dtype` (bf16 default). Bias/BN affine stay f32."""
    ks = jax.random.split(key, 6)

    def linear(kw, kb, fan_in, fan_out):
        bound = 1.0 / float(fan_in) ** 0.5
        w = jax.random.uniform(kw, (fan_in, fan_out), jnp.float32, -bound, bound)
        b = jax.random.uniform(kb, (1, fan_out), jnp.float32, -bound, bound)
        return w.astype(param_dtype), b

    w1, b1 = linear(ks[0], ks[1], in_dim, hidden_dim)
    w2, b2 = linear(ks[2], ks[3], hidden_dim, hidden_dim)
    w3, b3 = linear(ks[4], ks[5], hidden_dim, out_dim)
    ones = lambda n: jnp.ones((1, n), jnp.float32)
    zeros = lambda n: jnp.zeros((1, n), jnp.float32)
    return dict(
        w1=w1, b1=b1, g1=ones(hidden_dim), be1=zeros(hidden_dim),
        w2=w2, b2=b2, g2=ones(hidden_dim), be2=zeros(hidden_dim),
        w3=w3, b3=b3, g3=ones(out_dim), be3=zeros(out_dim),
    )


def reference_forward(x, p, num_layers=3):
    """Pure-JAX reference mirroring the PyTorch forward (training-mode BN),
    with the same bf16-input / f32-accumulate matmul quantization as the kernel."""
    cdt = p["w1"].dtype

    def layer(h, w, b, g, be, relu, keep_f32=False):
        y = jnp.dot(h.astype(cdt), w, preferred_element_type=jnp.float32) + b
        m = y.mean(0, keepdims=True)
        v = ((y - m) ** 2).mean(0, keepdims=True)
        y = (y - m) * jax.lax.rsqrt(v + EPS) * g + be
        if relu:
            y = jnp.maximum(y, 0.0)
        return y if keep_f32 else y.astype(cdt)

    h = layer(x, p["w1"], p["b1"], p["g1"], p["be1"], True)
    if num_layers == 3:
        h = layer(h, p["w2"], p["b2"], p["g2"], p["be2"], True)
    return layer(h, p["w3"], p["b3"], p["g3"], p["be3"], False, keep_f32=True)


if __name__ == "__main__":
    # Small shapes consistent with the module (Linear/BatchNorm1d over [B, dim]).
    batch, in_dim, hidden_dim, out_dim = 8, 16, 32, 32

    key = jax.random.PRNGKey(0)
    kx, kp = jax.random.split(key)
    x = jax.random.normal(kx, (batch, in_dim), jnp.float32)
    params = init_params(kp, in_dim, hidden_dim, out_dim)

    out = jax.block_until_ready(projection_mlp(x, params))
    ref = reference_forward(x, params)

    assert out.shape == (batch, out_dim)
    err = float(jnp.max(jnp.abs(out - ref)))
    # Tolerance covers bf16 quantization of intermediate activations vs the
    # f32 BN-math differences (single-pass var / fused affine) in the kernel.
    assert jnp.allclose(out, ref, atol=5e-3, rtol=5e-3), \
        f"mismatch vs reference, max abs err {err}"
    print("KERNEL_OK")
</pallas_src>

<mosaic_0001>
module attributes {stable_mosaic.version = 11 : i64} {
  func.func @_linear_bn_kernel(%arg0: i32, %arg1: i32, %arg2: memref<8x128xbf16, #tpu.memory_space<vmem>>, %arg3: memref<128x128xbf16, #tpu.memory_space<vmem>>, %arg4: memref<1x128xf32, #tpu.memory_space<vmem>>, %arg5: memref<1x128xf32, #tpu.memory_space<vmem>>, %arg6: memref<1x128xf32, #tpu.memory_space<vmem>>, %arg7: memref<8x128xbf16, #tpu.memory_space<vmem>>, %arg8: memref<8x128xf32, #tpu.memory_space<vmem>>) attributes {dimension_semantics = [#tpu.dimension_semantics<parallel>, #tpu.dimension_semantics<arbitrary>], iteration_bounds = array<i64: 1, 1>, scalar_prefetch = 0 : i64, scratch_operands = 1 : i64, tpu.core_type = #tpu.core_type<tc>, window_params = [{transform_indices = @transform_0, window_bounds = array<i64: 8, 128>}, {transform_indices = @transform_1, window_bounds = array<i64: 128, 128>}, {transform_indices = @transform_2, window_bounds = array<i64: 1, 128>}, {transform_indices = @transform_3, window_bounds = array<i64: 1, 128>}, {transform_indices = @transform_4, window_bounds = array<i64: 1, 128>}, {transform_indices = @transform_5, window_bounds = array<i64: 8, 128>}]} {
    %c0_i32 = arith.constant 0 : i32
    %0 = arith.cmpi eq, %arg1, %c0_i32 : i32
    %1 = arith.extui %0 : i1 to i32
    %c0_i32_0 = arith.constant 0 : i32
    %2 = arith.cmpi ne, %1, %c0_i32_0 : i32
    scf.if %2 {
      %cst_10 = arith.constant 0.000000e+00 : f32
      %12 = vector.broadcast %cst_10 : f32 to vector<8x128xf32>
      %c0_11 = arith.constant 0 : index
      %c0_12 = arith.constant 0 : index
      %13 = vector.load %arg8[%c0_11, %c0_12] : memref<8x128xf32, #tpu.memory_space<vmem>>, vector<8x128xf32>
      tpu.vector_store %arg8[%c0_11, %c0_12], %12 {strides = array<i32>} : memref<8x128xf32, #tpu.memory_space<vmem>>, vector<8x128xf32>,
    } else {
    }
    %c0 = arith.constant 0 : index
    %c0_1 = arith.constant 0 : index
    %3 = vector.load %arg8[%c0, %c0_1] : memref<8x128xf32, #tpu.memory_space<vmem>>, vector<8x128xf32>
    %c0_2 = arith.constant 0 : index
    %c0_3 = arith.constant 0 : index
    %4 = vector.load %arg2[%c0_2, %c0_3] : memref<8x128xbf16, #tpu.memory_space<vmem>>, vector<8x128xbf16>
    %c0_4 = arith.constant 0 : index
    %c0_5 = arith.constant 0 : index
    %5 = vector.load %arg3[%c0_4, %c0_5] : memref<128x128xbf16, #tpu.memory_space<vmem>>, vector<128x128xbf16>
    %cst = arith.constant dense<0.000000e+00> : vector<8x128xf32>
    %6 = tpu.matmul %4, %5, %cst {dimension_numbers = #tpu.dot_dimension_numbers<[1], [0], [0], [1], [0, 0, 1, 1], [], []>} : vector<8x128xbf16>, vector<128x128xbf16>, vector<8x128xf32> -> vector<8x128xf32>
    %7 = arith.addf %3, %6 : vector<8x128xf32>
    %c0_6 = arith.constant 0 : index
    %c0_7 = arith.constant 0 : index
    %8 = vector.load %arg8[%c0_6, %c0_7] : memref<8x128xf32, #tpu.memory_space<vmem>>, vector<8x128xf32>
    tpu.vector_store %arg8[%c0_6, %c0_7], %7 {strides = array<i32>} : memref<8x128xf32, #tpu.memory_space<vmem>>, vector<8x128xf32>,
    %c0_i32_8 = arith.constant 0 : i32
    %9 = arith.cmpi eq, %arg1, %c0_i32_8 : i32
    %10 = arith.extui %9 : i1 to i32
    %c0_i32_9 = arith.constant 0 : i32
    %11 = arith.cmpi ne, %10, %c0_i32_9 : i32
    scf.if %11 {
      %c0_10 = arith.constant 0 : index
      %c0_11 = arith.constant 0 : index
      %12 = vector.load %arg8[%c0_10, %c0_11] : memref<8x128xf32, #tpu.memory_space<vmem>>, vector<8x128xf32>
      %c0_12 = arith.constant 0 : index
      %c0_13 = arith.constant 0 : index
      %13 = vector.load %arg4[%c0_12, %c0_13] : memref<1x128xf32, #tpu.memory_space<vmem>>, vector<1x128xf32>
      %14 = vector.broadcast %13 : vector<1x128xf32> to vector<8x128xf32>
      %15 = arith.addf %12, %14 : vector<8x128xf32>
      %cst_14 = arith.constant dense<0.000000e+00> : vector<128xf32>
      %16 = vector.multi_reduction <add>, %15, %cst_14 [0] : vector<8x128xf32> to vector<128xf32>
      %17 = vector.shape_cast %16 : vector<128xf32> to vector<1x128xf32>
      %cst_15 = arith.constant 1.250000e-01 : f32
      %18 = vector.broadcast %cst_15 : f32 to vector<1x128xf32>
      %19 = arith.mulf %17, %18 : vector<1x128xf32>
      %20 = arith.mulf %15, %15 : vector<8x128xf32>
      %cst_16 = arith.constant dense<0.000000e+00> : vector<128xf32>
      %21 = vector.multi_reduction <add>, %20, %cst_16 [0] : vector<8x128xf32> to vector<128xf32>
      %22 = vector.shape_cast %21 : vector<128xf32> to vector<1x128xf32>
      %cst_17 = arith.constant 1.250000e-01 : f32
      %23 = vector.broadcast %cst_17 : f32 to vector<1x128xf32>
      %24 = arith.mulf %22, %23 : vector<1x128xf32>
      %25 = arith.mulf %19, %19 : vector<1x128xf32>
      %26 = arith.subf %24, %25 : vector<1x128xf32>
      %cst_18 = arith.constant 0.000000e+00 : f32
      %27 = vector.broadcast %cst_18 : f32 to vector<1x128xf32>
      %28 = arith.maximumf %26, %27 : vector<1x128xf32>
      %c0_19 = arith.constant 0 : index
      %c0_20 = arith.constant 0 : index
      %29 = vector.load %arg5[%c0_19, %c0_20] : memref<1x128xf32, #tpu.memory_space<vmem>>, vector<1x128xf32>
      %cst_21 = arith.constant 9.99999974E-6 : f32
      %30 = vector.broadcast %cst_21 : f32 to vector<1x128xf32>
      %31 = arith.addf %28, %30 : vector<1x128xf32>
      %32 = math.rsqrt %31 : vector<1x128xf32>
      %33 = arith.mulf %29, %32 : vector<1x128xf32>
      %c0_22 = arith.constant 0 : index
      %c0_23 = arith.constant 0 : index
      %34 = vector.load %arg6[%c0_22, %c0_23] : memref<1x128xf32, #tpu.memory_space<vmem>>, vector<1x128xf32>
      %35 = arith.mulf %19, %33 : vector<1x128xf32>
      %36 = arith.subf %34, %35 : vector<1x128xf32>
      %37 = vector.broadcast %33 : vector<1x128xf32> to vector<8x128xf32>
      %38 = arith.mulf %15, %37 : vector<8x128xf32>
      %39 = vector.broadcast %36 : vector<1x128xf32> to vector<8x128xf32>
      %40 = arith.addf %38, %39 : vector<8x128xf32>
      %cst_24 = arith.constant 0.000000e+00 : f32
      %41 = vector.broadcast %cst_24 : f32 to vector<8x128xf32>
      %42 = arith.maximumf %40, %41 : vector<8x128xf32>
      %43 = arith.truncf %42 : vector<8x128xf32> to vector<8x128xbf16>
      %c0_25 = arith.constant 0 : index
      %c0_26 = arith.constant 0 : index
      %44 = vector.load %arg7[%c0_25, %c0_26] : memref<8x128xbf16, #tpu.memory_space<vmem>>, vector<8x128xbf16>
      tpu.vector_store %arg7[%c0_25, %c0_26], %43 {strides = array<i32>} : memref<8x128xbf16, #tpu.memory_space<vmem>>, vector<8x128xbf16>,
    } else {
    }
    return
  }
  func.func @transform_0(%arg0: i32, %arg1: i32) -> (i32, i32) {
    %c0_i32 = arith.constant 0 : i32
    %c0_i32_0 = arith.constant 0 : i32
    return %c0_i32, %arg1 : i32, i32
  }
  func.func @transform_1(%arg0: i32, %arg1: i32) -> (i32, i32) {
    %c0_i32 = arith.constant 0 : i32
    return %arg1, %arg0 : i32, i32
  }
  func.func @transform_2(%arg0: i32, %arg1: i32) -> (i32, i32) {
    %c0_i32 = arith.constant 0 : i32
    %c0_i32_0 = arith.constant 0 : i32
    return %c0_i32, %arg0 : i32, i32
  }
  func.func @transform_3(%arg0: i32, %arg1: i32) -> (i32, i32) {
    %c0_i32 = arith.constant 0 : i32
    %c0_i32_0 = arith.constant 0 : i32
    return %c0_i32, %arg0 : i32, i32
  }
  func.func @transform_4(%arg0: i32, %arg1: i32) -> (i32, i32) {
    %c0_i32 = arith.constant 0 : i32
    %c0_i32_0 = arith.constant 0 : i32
    return %c0_i32, %arg0 : i32, i32
  }
  func.func @transform_5(%arg0: i32, %arg1: i32) -> (i32, i32) {
    %c0_i32 = arith.constant 0 : i32
    %c0_i32_0 = arith.constant 0 : i32
    return %c0_i32, %arg0 : i32, i32
  }
}

</mosaic_0001>

<llo_original>
// kernel: tpu_custom_call.1
$region0: #{tpu_custom_call.1}
  #allocation0 [shape = 'u32[]', space=smem, size = 0x4, offset = 0x4, fixed_abs, tag = 'smem constant byte address 0x4 - core index']
  #allocation1 [shape = 'u32[144,128]{1,0:T(1,128)}', space=vmem, size = 0x12000, scoped, tag = 'internal scratch']
  #allocation2 [shape = 'f32[8,128]{1,0:T(8,128)}', space=vmem, size = 0x1000, scoped, tag = 'scratch operand']
  %s0 = inlined_call_operand.hbm [shape: bf16[8,128], index: 0, kind: input, shape index: {}]
  %s1 = inlined_call_operand.hbm [shape: bf16[128,128], index: 1, kind: input, shape index: {}]
  %s2 = inlined_call_operand.vmem [shape: f32[1,128], index: 2, kind: input, shape index: {}]
  %s3 = inlined_call_operand.vmem [shape: f32[1,128], index: 3, kind: input, shape index: {}]
  %s4 = inlined_call_operand.vmem [shape: f32[1,128], index: 4, kind: input, shape index: {}]
  %s5 = inlined_call_operand.hbm [shape: bf16[8,128], index: 5, kind: output, shape index: {}]
  %s6 = sld [smem:[#allocation0]]
  $region46: #{tpu_custom_call.1} parent=0
    _
  %s8 = ssub.s32 1, %s6
  %s9 = scalar_select 0, %s8, %s6
  $region1: #{tpu_custom_call.1} parent=0
    #allocation3 [shape = 'u8[2048]{0}', space=vmem, size = 0x800, scoped, tag = 'input window, operand 0, single buffered']
    #allocation4 [shape = 's32[1]{0}', space=sflag, size = 0x4, scoped, tag = 'scoped memory for tpu_custom_call.1']
    #allocation5 [shape = 's32[1]{0}', space=sflag, size = 0x4, scoped, tag = 'scoped memory for tpu_custom_call.1']
    #allocation6 [shape = 'u8[32768]{0}', space=vmem, size = 0x8000, scoped, tag = 'input window, operand 1, single buffered']
    #allocation7 [shape = 's32[1]{0}', space=sflag, size = 0x4, scoped, tag = 'scoped memory for tpu_custom_call.1']
    #allocation8 [shape = 'u8[2048]{0}', space=vmem, size = 0x800, scoped, tag = 'output window, operand 0, single buffered']
    %10 = vsyncpa [#allocation4], 0
    %11 = vsyncpa [#allocation7], 0
    %12 = vsyncpa [#allocation5], 0
    // Predicated region
    $region2: #{tpu_custom_call.1} parent=1 // pred_check
      _
    $region3: #{tpu_custom_call.1} parent=1 // pred_check_branch
      %14 = sbr.rel (0) target = $region5
    $region4: #{tpu_custom_call.1} parent=1 // pred_region
      %s16 = ssub.s32 64, 64
      %17 = vsyncadd [#allocation4], %s16
      %s19 = sshll.u32 [#allocation3], 4
      %s20 = int_to_ptr.vmem [resolvable:$true] %s19
      %22 = dma.hbm_to_vmem [thread:$0]  %s0, 64, %s20, [#allocation4]
    $region5: #{tpu_custom_call.1} parent=1 // pred_fallthru
      _
    // Predicated region
    $region6: #{tpu_custom_call.1} parent=1 // pred_check
      _
    $region7: #{tpu_custom_call.1} parent=1 // pred_check_branch
      %24 = sbr.rel (0) target = $region9
    $region8: #{tpu_custom_call.1} parent=1 // pred_region
      %s26 = ssub.s32 1024, 1024
      %27 = vsyncadd [#allocation7], %s26
      %s28 = sshll.u32 [#allocation6], 4
      %s29 = int_to_ptr.vmem [resolvable:$true] %s28
      %34 = dma.hbm_to_vmem [thread:$0]  %s1, 1024, %s29, [#allocation7], 64, 64, 4
    $region9: #{tpu_custom_call.1} parent=1 // pred_fallthru
      _
    // Predicated region
    $region10: #{tpu_custom_call.1} parent=1 // pred_check
      _
    $region11: #{tpu_custom_call.1} parent=1 // pred_check_branch
      %36 = sbr.rel (0) target = $region13
    $region12: #{tpu_custom_call.1} parent=1 // pred_region
      _
    $region13: #{tpu_custom_call.1} parent=1 // pred_fallthru
      _
    // Predicated region
    $region14: #{tpu_custom_call.1} parent=1 // pred_check
      _
    $region15: #{tpu_custom_call.1} parent=1 // pred_check_branch
      %38 = sbr.rel (0) target = $region17
    $region16: #{tpu_custom_call.1} parent=1 // pred_region
      _
    $region17: #{tpu_custom_call.1} parent=1 // pred_fallthru
      _
    // Predicated region
    $region18: #{tpu_custom_call.1} parent=1 // pred_check
      _
    $region19: #{tpu_custom_call.1} parent=1 // pred_check_branch
      %40 = sbr.rel (0) target = $region21
    $region20: #{tpu_custom_call.1} parent=1 // pred_region
      _
    $region21: #{tpu_custom_call.1} parent=1 // pred_fallthru
      _
    // Predicated region
    $region22: #{tpu_custom_call.1} parent=1 // pred_check
      _
    $region23: #{tpu_custom_call.1} parent=1 // pred_check_branch
      %42 = sbr.rel (0) target = $region25
    $region24: #{tpu_custom_call.1} parent=1 // pred_region
      %43 = dma.done [#allocation4], 64
    $region25: #{tpu_custom_call.1} parent=1 // pred_fallthru
      _
    // Predicated region
    $region26: #{tpu_custom_call.1} parent=1 // pred_check
      _
    $region27: #{tpu_custom_call.1} parent=1 // pred_check_branch
      %45 = sbr.rel (0) target = $region29
    $region28: #{tpu_custom_call.1} parent=1 // pred_region
      %46 = dma.done [#allocation7], 1024
    $region29: #{tpu_custom_call.1} parent=1 // pred_fallthru
      _
    %p48 = scmp.eq.s32.totalorder 0, 0
    // Predicated region
    $region30: #{tpu_custom_call.1} parent=1 // pred_check
      %p49 = pneg %p48
    $region31: #{tpu_custom_call.1} parent=1 // pred_check_branch
      %51 = sbr.rel (%p49) target = $region33
    $region32: #{tpu_custom_call.1} parent=1 // pred_region
      %52 = vst [vmem:[#allocation2] sm:$0xff] 0.0
    $region33: #{tpu_custom_call.1} parent=1 // pred_fallthru
      _
    %v53 = vld [vmem:[#allocation2] sm:$0xff]
    %v54 = vld [vmem:[#allocation3] sm:$0xf]
    %v55 = vld [vmem:[#allocation6] sm:$0xf]
    %v56 = vld [vmem:[#allocation6 + $0x4] sm:$0xf]
    %v57 = vld [vmem:[#allocation6 + $0x8] sm:$0xf]
    %v58 = vld [vmem:[#allocation6 + $0xc] sm:$0xf]
    %v59 = vld [vmem:[#allocation6 + $0x10] sm:$0xf]
    %v60 = vld [vmem:[#allocation6 + $0x14] sm:$0xf]
    %v61 = vld [vmem:[#allocation6 + $0x18] sm:$0xf]
    %v62 = vld [vmem:[#allocation6 + $0x1c] sm:$0xf]
    %v63 = vld [vmem:[#allocation6 + $0x20] sm:$0xf]
    %v64 = vld [vmem:[#allocation6 + $0x24] sm:$0xf]
    %v65 = vld [vmem:[#allocation6 + $0x28] sm:$0xf]
    %v66 = vld [vmem:[#allocation6 + $0x2c] sm:$0xf]
    %v67 = vld [vmem:[#allocation6 + $0x30] sm:$0xf]
    %v68 = vld [vmem:[#allocation6 + $0x34] sm:$0xf]
    %v69 = vld [vmem:[#allocation6 + $0x38] sm:$0xf]
    %v70 = vld [vmem:[#allocation6 + $0x3c] sm:$0xf]
    %v87 = vunpack.c.l.b16 %v55
    %v88 = vunpack.c.l.b16 %v56
    %v89 = vunpack.c.l.b16 %v57
    %v90 = vunpack.c.l.b16 %v58
    %v91 = vunpack.c.l.b16 %v59
    %v92 = vunpack.c.l.b16 %v60
    %v93 = vunpack.c.l.b16 %v61
    %v94 = vunpack.c.l.b16 %v62
    %v95 = vunpack.c.l.b16 %v63
    %v96 = vunpack.c.l.b16 %v64
    %v97 = vunpack.c.l.b16 %v65
    %v98 = vunpack.c.l.b16 %v66
    %v99 = vunpack.c.l.b16 %v67
    %v100 = vunpack.c.l.b16 %v68
    %v101 = vunpack.c.l.b16 %v69
    %v102 = vunpack.c.l.b16 %v70
    %v103 = vpack.c.b16 %v88, %v87
    %v104 = vpack.c.b16 %v90, %v89
    %v105 = vpack.c.b16 %v92, %v91
    %v106 = vpack.c.b16 %v94, %v93
    %v107 = vpack.c.b16 %v96, %v95
    %v108 = vpack.c.b16 %v98, %v97
    %v109 = vpack.c.b16 %v100, %v99
    %v110 = vpack.c.b16 %v102, %v101
    %119 = vmatprep.subr.bf16.mxu0 0
    %120 = vmatpush1.bf16.msra.mxu0 %v103
    %121 = vmatprep.subr.bf16.mxu0 0
    %122 = vmatpush1.bf16.msra.mxu0 %v104
    %123 = vmatprep.subr.bf16.mxu0 0
    %124 = vmatpush1.bf16.msra.mxu0 %v105
    %125 = vmatprep.subr.bf16.mxu0 0
    %126 = vmatpush1.bf16.msra.mxu0 %v106
    %127 = vmatprep.subr.bf16.mxu0 0
    %128 = vmatpush1.bf16.msra.mxu0 %v107
    %129 = vmatprep.subr.bf16.mxu0 0
    %130 = vmatpush1.bf16.msra.mxu0 %v108
    %131 = vmatprep.subr.bf16.mxu0 0
    %132 = vmatpush1.bf16.msra.mxu0 %v109
    %133 = vmatprep.subr.bf16.mxu0 0
    %134 = vmatpush1.bf16.msra.mxu0 %v110
    %135 = vmatprep.subr.bf16.mxu0 0
    %136 = vmatpush1.bf16.msra.mxu0 0
    %137 = vmatprep.subr.bf16.mxu0 0
    %138 = vmatpush1.bf16.msra.mxu0 0
    %139 = vmatprep.subr.bf16.mxu0 0
    %140 = vmatpush1.bf16.msra.mxu0 0
    %141 = vmatprep.subr.bf16.mxu0 0
    %142 = vmatpush1.bf16.msra.mxu0 0
    %143 = vmatprep.subr.bf16.mxu0 0
    %144 = vmatpush1.bf16.msra.mxu0 0
    %145 = vmatprep.subr.bf16.mxu0 0
    %146 = vmatpush1.bf16.msra.mxu0 0
    %147 = vmatprep.subr.bf16.mxu0 0
    %148 = vmatpush1.bf16.msra.mxu0 0
    %149 = vmatprep.subr.bf16.mxu0 0
    %150 = vmatpush1.bf16.msra.mxu0 0
    %151 = vmatprep.mubr.bf16.mxu0 0
    %152 = vmatmul.mubr.bf16.gmra.mrb[0].mxu0 %v54
    %v153 = vpop.f32.mrb[0].mxu0
    %v154 = vadd.f32 0.0, %v153
    %v155 = vpop.f32.mrb[0].mxu0
    %v156 = vpop.f32.mrb[0].mxu0
    %v157 = vpop.f32.mrb[0].mxu0
    %158 = vdwg.mxu0
    %v159 = vadd.f32 %v53, %v154
    %160 = vst [vmem:[#allocation2] sm:$0xff] %v159
    // Predicated region
    $region34: #{tpu_custom_call.1} parent=1 // pred_check
      %p161 = pneg %p48
    $region35: #{tpu_custom_call.1} parent=1 // pred_check_branch
      %163 = sbr.rel (%p161) target = $region37
    $region36: #{tpu_custom_call.1} parent=1 // pred_region
      %v164 = vld [vmem:[#allocation2] sm:$0xff]
      %v165 = vld [vmem:[%s2] sm:$0x1]
      %v167 = vlaneseq
      %v168 = vshrl.u32 %v167, 7
      %v169 = vsub.s32 0, %v168
      %v170 = vrot.slane %v165, %v169
      %v172 = vadd.f32 %v164, %v170
      %v173 = vrot.slane %v172, 4
      %v174 = vadd.f32 %v172, %v173
      %v175 = vrot.slane %v174, 2
      %v176 = vadd.f32 %v174, %v175
      %v177 = vrot.slane %v176, 1
      %v178 = vadd.f32 %v176, %v177
      %v179 = vmul.f32 %v178, 0.125
      %v180 = vmul.f32 %v172, %v172
      %v181 = vrot.slane %v180, 4
      %v182 = vadd.f32 %v180, %v181
      %v183 = vrot.slane %v182, 2
      %v184 = vadd.f32 %v182, %v183
      %v185 = vrot.slane %v184, 1
      %v186 = vadd.f32 %v184, %v185
      %v187 = vmul.f32 %v186, 0.125
      %v188 = vmul.f32 %v179, %v179
      %v189 = vsub.f32 %v187, %v188
      %v190 = vmax.f32 %v189, 0.0
      %v191 = vld [vmem:[%s3] sm:$0x1]
      %v192 = vadd.f32 %v190, 1e-05
      %v193 = vrsqrt.pop %v192
      %v194 = vmul.f32 %v191, %v193
      %v195 = vld [vmem:[%s4] sm:$0x1]
      %v196 = vmul.f32 %v179, %v194
      %v197 = vsub.f32 %v195, %v196
      %v199 = vlaneseq
      %v200 = vshrl.u32 %v199, 7
      %v201 = vsub.s32 0, %v200
      %v202 = vrot.slane %v194, %v201
      %v204 = vmul.f32 %v172, %v202
      %v206 = vlaneseq
      %v207 = vshrl.u32 %v206, 7
      %v208 = vsub.s32 0, %v207
      %v209 = vrot.slane %v197, %v208
      %v211 = vadd.f32 %v204, %v209
      %v212 = vmax.f32 %v211, 0.0
      %v213 = vpack.c.bf16 %v212, %v212
      %214 = vst [vmem:[#allocation8] sm:$0xf] %v213
    $region37: #{tpu_custom_call.1} parent=1 // pred_fallthru
      _
    // Predicated region
    $region38: #{tpu_custom_call.1} parent=1 // pred_check
      _
    $region39: #{tpu_custom_call.1} parent=1 // pred_check_branch
      %216 = sbr.rel (0) target = $region41
    $region40: #{tpu_custom_call.1} parent=1 // pred_region
      %s218 = ssub.s32 64, 64
      %219 = vsyncadd [#allocation5], %s218
      %s221 = sshll.u32 [#allocation8], 4
      %s222 = int_to_ptr.vmem [resolvable:$true] %s221
      %224 = dma.vmem_to_hbm [thread:$0]  %s222, 64, %s5, [#allocation5]
    $region41: #{tpu_custom_call.1} parent=1 // pred_fallthru
      _
    // Predicated region
    $region42: #{tpu_custom_call.1} parent=1 // pred_check
      _
    $region43: #{tpu_custom_call.1} parent=1 // pred_check_branch
      %226 = sbr.rel (0) target = $region45
    $region44: #{tpu_custom_call.1} parent=1 // pred_region
      %227 = dma.done [#allocation5], 64
    $region45: #{tpu_custom_call.1} parent=1 // pred_fallthru
      _
    %228 = vsyncpa [#allocation4], 1
    %229 = vsyncpa [#allocation7], 1
    %230 = vsyncpa [#allocation5], 1

</llo_original>
